<compile_context>
chip_gen: v7x
topology: tpu7x:2x2x1
jax: 0.10.0
libtpu: 0.0.40
codegen_flags: <defaults>
</compile_context>

<pallas_src>
import functools

import jax
import jax.numpy as jnp
from jax.experimental import pallas as pl
from jax.experimental.pallas import tpu as pltpu

# ---- CFG-equivalent hyperparameters (synthetic, deterministic) -------------
B = 8              # batch size
S = 8              # sequence length
E = 32             # CFG.ec_embedding
P = 32             # CFG.projection_dim
VOCAB = 64         # synthetic vocab for the stand-in encoder
TEMPERATURE = 1.0  # CFG.temperature
LN_EPS = 1e-5      # torch.nn.LayerNorm default eps
INV_SQRT2 = 0.7071067811865476


# ---------------------------------------------------------------------------
# Single fused kernel: encoder stand-in -> projection head (x2, stacked) ->
# CLIP loss -> scalar.
# ---------------------------------------------------------------------------
def _crese_fused_kernel(ids1_ref, ids2_ref, mask1_ref, mask2_ref, embed_ref,
                        w1_ref, b1_ref, w2_ref, b2_ref, gamma_ref, beta_ref,
                        loss_ref, *, temperature):
    # ---- stack both EC views: rows [0,B) = view 1, rows [B,2B) = view 2 ----
    ids = jnp.concatenate([ids1_ref[...], ids2_ref[...]], axis=0)          # (2B,S) i32
    mask = jnp.concatenate([mask1_ref[...], mask2_ref[...]], axis=0)
    mask = mask.astype(jnp.float32)                                        # (2B,S) f32

    # ---- EcEncoder stand-in: embedding lookup + masked mean pool ----------
    # Fused as a mask-weighted one-hot histogram followed by one MXU matmul:
    #   feats[b] = (sum_s mask[b,s] * table[ids[b,s]]) / sum_s mask[b,s]
    vocab_iota = jax.lax.broadcasted_iota(jnp.int32, (2 * B, S, VOCAB), 2)
    one_hot = (ids[:, :, None] == vocab_iota).astype(jnp.float32)          # (2B,S,V)
    counts = jnp.sum(one_hot * mask[:, :, None], axis=1)                   # (2B,V)
    den = jnp.sum(mask, axis=1, keepdims=True)                             # (2B,1)
    feats = jnp.dot(counts, embed_ref[...],
                    preferred_element_type=jnp.float32) / den              # (2B,E)

    # ---- ProjectionHead (shared weights, both views in one matmul/layer) --
    projected = jnp.dot(feats, w1_ref[...],
                        preferred_element_type=jnp.float32) + b1_ref[...]  # (2B,P)
    # exact erf-based GELU, matching torch.nn.GELU() default
    h = 0.5 * projected * (1.0 + jax.lax.erf(projected * INV_SQRT2))
    h = jnp.dot(h, w2_ref[...], preferred_element_type=jnp.float32) + b2_ref[...]
    # dropout -> identity (deterministic forward)
    h = h + projected
    mean = jnp.mean(h, axis=-1, keepdims=True)
    var = jnp.mean((h - mean) * (h - mean), axis=-1, keepdims=True)
    emb = (h - mean) * jax.lax.rsqrt(var + LN_EPS) * gamma_ref[...] + beta_ref[...]

    # ---- CLIP loss via a single Gram matrix --------------------------------
    # gram = [e1;e2] @ [e1;e2].T : quadrants are sim1, sim2, logits, logits.T
    gram = jax.lax.dot_general(emb, emb, (((1,), (1,)), ((), ())),
                               preferred_element_type=jnp.float32)         # (2B,2B)
    inv_t = 1.0 / temperature
    m = (gram[:B, :B] + gram[B:, B:]) * (0.5 * temperature)   # symmetric targets-logits
    logits = gram[B:, :B] * inv_t                             # e2 @ e1.T / T
    logits_t = gram[:B, B:] * inv_t                           # == logits.T (no transpose)

    def _row_softmax(z):
        z = z - jnp.max(z, axis=-1, keepdims=True)
        ez = jnp.exp(z)
        return ez / jnp.sum(ez, axis=-1, keepdims=True)

    def _col_softmax(z):
        z = z - jnp.max(z, axis=0, keepdims=True)
        ez = jnp.exp(z)
        return ez / jnp.sum(ez, axis=0, keepdims=True)

    def _row_log_softmax(z):
        z = z - jnp.max(z, axis=-1, keepdims=True)
        return z - jnp.log(jnp.sum(jnp.exp(z), axis=-1, keepdims=True))

    targets = _row_softmax(m)          # F.softmax(M, dim=-1)
    targets_t = _col_softmax(m)        # == targets.T because M is symmetric

    titles_loss = jnp.sum(-targets * _row_log_softmax(logits),
                          axis=1, keepdims=True)                           # (B,1)
    ecs_loss = jnp.sum(-targets_t * _row_log_softmax(logits_t),
                       axis=1, keepdims=True)                              # (B,1)
    # loss.mean() over the batch of (titles_loss + ecs_loss)/2
    loss_ref[0] = (jnp.sum(titles_loss) + jnp.sum(ecs_loss)) * (0.5 / B)


def crese_forward(batch, params, temperature=TEMPERATURE):
    kernel = functools.partial(_crese_fused_kernel, temperature=float(temperature))
    loss = pl.pallas_call(
        kernel,
        out_shape=jax.ShapeDtypeStruct((1,), jnp.float32),
        in_specs=[pl.BlockSpec(memory_space=pltpu.MemorySpace.VMEM)] * 11,
        out_specs=pl.BlockSpec(memory_space=pltpu.MemorySpace.SMEM),
    )(
        batch["input_ids_ecs1"].astype(jnp.int32),
        batch["input_ids_ecs2"].astype(jnp.int32),
        batch["attention_mask_ecs1"].astype(jnp.int32),
        batch["attention_mask_ecs2"].astype(jnp.int32),
        params["embed"], params["w1"], params["b1"], params["w2"],
        params["b2"], params["gamma"], params["beta"],
    )
    return loss[0]


if __name__ == "__main__":
    key = jax.random.PRNGKey(0)
    keys = jax.random.split(key, 10)

    params = {
        "embed": jax.random.normal(keys[0], (VOCAB, E), jnp.float32) * 0.02,
        "w1": jax.random.normal(keys[1], (E, P), jnp.float32) * 0.05,
        "b1": jax.random.normal(keys[2], (1, P), jnp.float32) * 0.01,
        "w2": jax.random.normal(keys[3], (P, P), jnp.float32) * 0.05,
        "b2": jax.random.normal(keys[4], (1, P), jnp.float32) * 0.01,
        "gamma": jnp.ones((1, P), jnp.float32),
        "beta": jnp.zeros((1, P), jnp.float32),
    }

    ids1 = jax.random.randint(keys[5], (B, S), 0, VOCAB)
    ids2 = jax.random.randint(keys[6], (B, S), 0, VOCAB)
    len1 = jax.random.randint(keys[7], (B,), 1, S + 1)
    len2 = jax.random.randint(keys[8], (B,), 1, S + 1)
    mask1 = (jnp.arange(S)[None, :] < len1[:, None]).astype(jnp.int32)
    mask2 = (jnp.arange(S)[None, :] < len2[:, None]).astype(jnp.int32)

    batch = {
        "input_ids_ecs1": ids1,
        "attention_mask_ecs1": mask1,
        "input_ids_ecs2": ids2,
        "attention_mask_ecs2": mask2,
    }

    loss = crese_forward(batch, params)
    jax.block_until_ready(loss)
    assert loss.shape == () and jnp.isfinite(loss)
    print("KERNEL_OK")
</pallas_src>

<mosaic_0001>
module attributes {stable_mosaic.version = 11 : i64} {
  func.func @_crese_fused_kernel(%arg0: memref<8x8xi32, #tpu.memory_space<vmem>>, %arg1: memref<8x8xi32, #tpu.memory_space<vmem>>, %arg2: memref<8x8xi32, #tpu.memory_space<vmem>>, %arg3: memref<8x8xi32, #tpu.memory_space<vmem>>, %arg4: memref<64x32xf32, #tpu.memory_space<vmem>>, %arg5: memref<32x32xf32, #tpu.memory_space<vmem>>, %arg6: memref<1x32xf32, #tpu.memory_space<vmem>>, %arg7: memref<32x32xf32, #tpu.memory_space<vmem>>, %arg8: memref<1x32xf32, #tpu.memory_space<vmem>>, %arg9: memref<1x32xf32, #tpu.memory_space<vmem>>, %arg10: memref<1x32xf32, #tpu.memory_space<vmem>>, %arg11: memref<1xf32, #tpu.memory_space<smem>>) attributes {dimension_semantics = [], scalar_prefetch = 0 : i64, scratch_operands = 0 : i64, tpu.core_type = #tpu.core_type<tc>} {
    %c0 = arith.constant 0 : index
    %c0_0 = arith.constant 0 : index
    %0 = vector.load %arg0[%c0, %c0_0] : memref<8x8xi32, #tpu.memory_space<vmem>>, vector<8x8xi32>
    %c0_1 = arith.constant 0 : index
    %c0_2 = arith.constant 0 : index
    %1 = vector.load %arg1[%c0_1, %c0_2] : memref<8x8xi32, #tpu.memory_space<vmem>>, vector<8x8xi32>
    %2 = tpu.concatenate %0, %1 in 0 : vector<8x8xi32>, vector<8x8xi32> -> vector<16x8xi32>
    %c0_3 = arith.constant 0 : index
    %c0_4 = arith.constant 0 : index
    %3 = vector.load %arg2[%c0_3, %c0_4] : memref<8x8xi32, #tpu.memory_space<vmem>>, vector<8x8xi32>
    %c0_5 = arith.constant 0 : index
    %c0_6 = arith.constant 0 : index
    %4 = vector.load %arg3[%c0_5, %c0_6] : memref<8x8xi32, #tpu.memory_space<vmem>>, vector<8x8xi32>
    %5 = tpu.concatenate %3, %4 in 0 : vector<8x8xi32>, vector<8x8xi32> -> vector<16x8xi32>
    %6 = arith.sitofp %5 : vector<16x8xi32> to vector<16x8xf32>
    %7 = tpu.iota {dimensions = array<i32: 2>} : vector<16x8x64xi32>
    %8 = vector.shape_cast %2 : vector<16x8xi32> to vector<16x8x1xi32>
    %9 = vector.broadcast %8 : vector<16x8x1xi32> to vector<16x8x64xi32>
    %10 = arith.cmpi eq, %9, %7 : vector<16x8x64xi32>
    %11 = arith.extui %10 : vector<16x8x64xi1> to vector<16x8x64xi32>
    %12 = arith.sitofp %11 : vector<16x8x64xi32> to vector<16x8x64xf32>
    %13 = vector.shape_cast %6 : vector<16x8xf32> to vector<16x8x1xf32>
    %14 = vector.broadcast %13 : vector<16x8x1xf32> to vector<16x8x64xf32>
    %15 = arith.mulf %12, %14 : vector<16x8x64xf32>
    %cst = arith.constant dense<0.000000e+00> : vector<16x64xf32>
    %16 = vector.multi_reduction <add>, %15, %cst [1] : vector<16x8x64xf32> to vector<16x64xf32>
    %cst_7 = arith.constant dense<0.000000e+00> : vector<16xf32>
    %17 = vector.multi_reduction <add>, %6, %cst_7 [1] : vector<16x8xf32> to vector<16xf32>
    %18 = vector.shape_cast %17 : vector<16xf32> to vector<16x1xf32>
    %c0_8 = arith.constant 0 : index
    %c0_9 = arith.constant 0 : index
    %19 = vector.load %arg4[%c0_8, %c0_9] : memref<64x32xf32, #tpu.memory_space<vmem>>, vector<64x32xf32>
    %cst_10 = arith.constant dense<0.000000e+00> : vector<16x32xf32>
    %20 = tpu.matmul %16, %19, %cst_10 {dimension_numbers = #tpu.dot_dimension_numbers<[1], [0], [0], [1], [0, 0, 1, 1], [], []>} : vector<16x64xf32>, vector<64x32xf32>, vector<16x32xf32> -> vector<16x32xf32>
    %21 = vector.broadcast %18 : vector<16x1xf32> to vector<16x32xf32>
    %22 = arith.divf %20, %21 : vector<16x32xf32>
    %c0_11 = arith.constant 0 : index
    %c0_12 = arith.constant 0 : index
    %23 = vector.load %arg5[%c0_11, %c0_12] : memref<32x32xf32, #tpu.memory_space<vmem>>, vector<32x32xf32>
    %cst_13 = arith.constant dense<0.000000e+00> : vector<16x32xf32>
    %24 = tpu.matmul %22, %23, %cst_13 {dimension_numbers = #tpu.dot_dimension_numbers<[1], [0], [0], [1], [0, 0, 1, 1], [], []>} : vector<16x32xf32>, vector<32x32xf32>, vector<16x32xf32> -> vector<16x32xf32>
    %c0_14 = arith.constant 0 : index
    %c0_15 = arith.constant 0 : index
    %25 = vector.load %arg6[%c0_14, %c0_15] : memref<1x32xf32, #tpu.memory_space<vmem>>, vector<1x32xf32>
    %26 = vector.broadcast %25 : vector<1x32xf32> to vector<16x32xf32>
    %27 = arith.addf %24, %26 : vector<16x32xf32>
    %cst_16 = arith.constant 5.000000e-01 : f32
    %28 = vector.broadcast %cst_16 : f32 to vector<16x32xf32>
    %29 = arith.mulf %28, %27 : vector<16x32xf32>
    %cst_17 = arith.constant 0.707106769 : f32
    %30 = vector.broadcast %cst_17 : f32 to vector<16x32xf32>
    %31 = arith.mulf %27, %30 : vector<16x32xf32>
    %32 = math.erf %31 : vector<16x32xf32>
    %cst_18 = arith.constant 1.000000e+00 : f32
    %33 = vector.broadcast %cst_18 : f32 to vector<16x32xf32>
    %34 = arith.addf %33, %32 : vector<16x32xf32>
    %35 = arith.mulf %29, %34 : vector<16x32xf32>
    %c0_19 = arith.constant 0 : index
    %c0_20 = arith.constant 0 : index
    %36 = vector.load %arg7[%c0_19, %c0_20] : memref<32x32xf32, #tpu.memory_space<vmem>>, vector<32x32xf32>
    %cst_21 = arith.constant dense<0.000000e+00> : vector<16x32xf32>
    %37 = tpu.matmul %35, %36, %cst_21 {dimension_numbers = #tpu.dot_dimension_numbers<[1], [0], [0], [1], [0, 0, 1, 1], [], []>} : vector<16x32xf32>, vector<32x32xf32>, vector<16x32xf32> -> vector<16x32xf32>
    %c0_22 = arith.constant 0 : index
    %c0_23 = arith.constant 0 : index
    %38 = vector.load %arg8[%c0_22, %c0_23] : memref<1x32xf32, #tpu.memory_space<vmem>>, vector<1x32xf32>
    %39 = vector.broadcast %38 : vector<1x32xf32> to vector<16x32xf32>
    %40 = arith.addf %37, %39 : vector<16x32xf32>
    %41 = arith.addf %40, %27 : vector<16x32xf32>
    %cst_24 = arith.constant dense<0.000000e+00> : vector<16xf32>
    %42 = vector.multi_reduction <add>, %41, %cst_24 [1] : vector<16x32xf32> to vector<16xf32>
    %43 = vector.shape_cast %42 : vector<16xf32> to vector<16x1xf32>
    %cst_25 = arith.constant 3.200000e+01 : f32
    %44 = vector.broadcast %cst_25 : f32 to vector<16x1xf32>
    %45 = arith.divf %43, %44 : vector<16x1xf32>
    %46 = vector.broadcast %45 : vector<16x1xf32> to vector<16x32xf32>
    %47 = arith.subf %41, %46 : vector<16x32xf32>
    %48 = vector.broadcast %45 : vector<16x1xf32> to vector<16x32xf32>
    %49 = arith.subf %41, %48 : vector<16x32xf32>
    %50 = arith.mulf %47, %49 : vector<16x32xf32>
    %cst_26 = arith.constant dense<0.000000e+00> : vector<16xf32>
    %51 = vector.multi_reduction <add>, %50, %cst_26 [1] : vector<16x32xf32> to vector<16xf32>
    %52 = vector.shape_cast %51 : vector<16xf32> to vector<16x1xf32>
    %cst_27 = arith.constant 3.200000e+01 : f32
    %53 = vector.broadcast %cst_27 : f32 to vector<16x1xf32>
    %54 = arith.divf %52, %53 : vector<16x1xf32>
    %55 = vector.broadcast %45 : vector<16x1xf32> to vector<16x32xf32>
    %56 = arith.subf %41, %55 : vector<16x32xf32>
    %cst_28 = arith.constant 9.99999974E-6 : f32
    %57 = vector.broadcast %cst_28 : f32 to vector<16x1xf32>
    %58 = arith.addf %54, %57 : vector<16x1xf32>
    %59 = math.rsqrt %58 : vector<16x1xf32>
    %60 = vector.broadcast %59 : vector<16x1xf32> to vector<16x32xf32>
    %61 = arith.mulf %56, %60 : vector<16x32xf32>
    %c0_29 = arith.constant 0 : index
    %c0_30 = arith.constant 0 : index
    %62 = vector.load %arg9[%c0_29, %c0_30] : memref<1x32xf32, #tpu.memory_space<vmem>>, vector<1x32xf32>
    %63 = vector.broadcast %62 : vector<1x32xf32> to vector<16x32xf32>
    %64 = arith.mulf %61, %63 : vector<16x32xf32>
    %c0_31 = arith.constant 0 : index
    %c0_32 = arith.constant 0 : index
    %65 = vector.load %arg10[%c0_31, %c0_32] : memref<1x32xf32, #tpu.memory_space<vmem>>, vector<1x32xf32>
    %66 = vector.broadcast %65 : vector<1x32xf32> to vector<16x32xf32>
    %67 = arith.addf %64, %66 : vector<16x32xf32>
    %cst_33 = arith.constant dense<0.000000e+00> : vector<16x16xf32>
    %68 = tpu.matmul %67, %67, %cst_33 {dimension_numbers = #tpu.dot_dimension_numbers<[1], [1], [0], [0], [0, 0, 1, 0], [], []>} : vector<16x32xf32>, vector<16x32xf32>, vector<16x16xf32> -> vector<16x16xf32>
    %69 = vector.extract_strided_slice %68 {offsets = [0, 0], sizes = [8, 8], strides = [1, 1]} : vector<16x16xf32> to vector<8x8xf32>
    %70 = vector.extract_strided_slice %68 {offsets = [8, 8], sizes = [8, 8], strides = [1, 1]} : vector<16x16xf32> to vector<8x8xf32>
    %71 = arith.addf %69, %70 : vector<8x8xf32>
    %cst_34 = arith.constant 5.000000e-01 : f32
    %72 = vector.broadcast %cst_34 : f32 to vector<8x8xf32>
    %73 = arith.mulf %71, %72 : vector<8x8xf32>
    %74 = vector.extract_strided_slice %68 {offsets = [8, 0], sizes = [8, 8], strides = [1, 1]} : vector<16x16xf32> to vector<8x8xf32>
    %cst_35 = arith.constant 1.000000e+00 : f32
    %75 = vector.broadcast %cst_35 : f32 to vector<8x8xf32>
    %76 = arith.mulf %74, %75 : vector<8x8xf32>
    %77 = vector.extract_strided_slice %68 {offsets = [0, 8], sizes = [8, 8], strides = [1, 1]} : vector<16x16xf32> to vector<8x8xf32>
    %cst_36 = arith.constant 1.000000e+00 : f32
    %78 = vector.broadcast %cst_36 : f32 to vector<8x8xf32>
    %79 = arith.mulf %77, %78 : vector<8x8xf32>
    %cst_37 = arith.constant dense<0xFF800000> : vector<8xf32>
    %80 = vector.multi_reduction <maximumf>, %73, %cst_37 [1] : vector<8x8xf32> to vector<8xf32>
    %81 = vector.shape_cast %80 : vector<8xf32> to vector<8x1xf32>
    %82 = vector.broadcast %81 : vector<8x1xf32> to vector<8x8xf32>
    %83 = arith.subf %73, %82 : vector<8x8xf32>
    %84 = math.exp %83 : vector<8x8xf32>
    %cst_38 = arith.constant dense<0.000000e+00> : vector<8xf32>
    %85 = vector.multi_reduction <add>, %84, %cst_38 [1] : vector<8x8xf32> to vector<8xf32>
    %86 = vector.shape_cast %85 : vector<8xf32> to vector<8x1xf32>
    %87 = vector.broadcast %86 : vector<8x1xf32> to vector<8x8xf32>
    %88 = arith.divf %84, %87 : vector<8x8xf32>
    %cst_39 = arith.constant dense<0xFF800000> : vector<8xf32>
    %89 = vector.multi_reduction <maximumf>, %73, %cst_39 [0] : vector<8x8xf32> to vector<8xf32>
    %90 = vector.shape_cast %89 : vector<8xf32> to vector<1x8xf32>
    %91 = vector.broadcast %90 : vector<1x8xf32> to vector<8x8xf32>
    %92 = arith.subf %73, %91 : vector<8x8xf32>
    %93 = math.exp %92 : vector<8x8xf32>
    %cst_40 = arith.constant dense<0.000000e+00> : vector<8xf32>
    %94 = vector.multi_reduction <add>, %93, %cst_40 [0] : vector<8x8xf32> to vector<8xf32>
    %95 = vector.shape_cast %94 : vector<8xf32> to vector<1x8xf32>
    %96 = vector.broadcast %95 : vector<1x8xf32> to vector<8x8xf32>
    %97 = arith.divf %93, %96 : vector<8x8xf32>
    %cst_41 = arith.constant 0.000000e+00 : f32
    %98 = vector.broadcast %cst_41 : f32 to vector<8x8xf32>
    %99 = arith.subf %98, %88 : vector<8x8xf32>
    %cst_42 = arith.constant dense<0xFF800000> : vector<8xf32>
    %100 = vector.multi_reduction <maximumf>, %76, %cst_42 [1] : vector<8x8xf32> to vector<8xf32>
    %101 = vector.shape_cast %100 : vector<8xf32> to vector<8x1xf32>
    %102 = vector.broadcast %101 : vector<8x1xf32> to vector<8x8xf32>
    %103 = arith.subf %76, %102 : vector<8x8xf32>
    %104 = math.exp %103 : vector<8x8xf32>
    %cst_43 = arith.constant dense<0.000000e+00> : vector<8xf32>
    %105 = vector.multi_reduction <add>, %104, %cst_43 [1] : vector<8x8xf32> to vector<8xf32>
    %106 = vector.shape_cast %105 : vector<8xf32> to vector<8x1xf32>
    %107 = math.log %106 : vector<8x1xf32>
    %108 = vector.broadcast %107 : vector<8x1xf32> to vector<8x8xf32>
    %109 = arith.subf %103, %108 : vector<8x8xf32>
    %110 = arith.mulf %99, %109 : vector<8x8xf32>
    %cst_44 = arith.constant dense<0.000000e+00> : vector<8xf32>
    %111 = vector.multi_reduction <add>, %110, %cst_44 [1] : vector<8x8xf32> to vector<8xf32>
    %112 = vector.shape_cast %111 : vector<8xf32> to vector<8x1xf32>
    %cst_45 = arith.constant 0.000000e+00 : f32
    %113 = vector.broadcast %cst_45 : f32 to vector<8x8xf32>
    %114 = arith.subf %113, %97 : vector<8x8xf32>
    %cst_46 = arith.constant dense<0xFF800000> : vector<8xf32>
    %115 = vector.multi_reduction <maximumf>, %79, %cst_46 [1] : vector<8x8xf32> to vector<8xf32>
    %116 = vector.shape_cast %115 : vector<8xf32> to vector<8x1xf32>
    %117 = vector.broadcast %116 : vector<8x1xf32> to vector<8x8xf32>
    %118 = arith.subf %79, %117 : vector<8x8xf32>
    %119 = math.exp %118 : vector<8x8xf32>
    %cst_47 = arith.constant dense<0.000000e+00> : vector<8xf32>
    %120 = vector.multi_reduction <add>, %119, %cst_47 [1] : vector<8x8xf32> to vector<8xf32>
    %121 = vector.shape_cast %120 : vector<8xf32> to vector<8x1xf32>
    %122 = math.log %121 : vector<8x1xf32>
    %123 = vector.broadcast %122 : vector<8x1xf32> to vector<8x8xf32>
    %124 = arith.subf %118, %123 : vector<8x8xf32>
    %125 = arith.mulf %114, %124 : vector<8x8xf32>
    %cst_48 = arith.constant dense<0.000000e+00> : vector<8xf32>
    %126 = vector.multi_reduction <add>, %125, %cst_48 [1] : vector<8x8xf32> to vector<8xf32>
    %127 = vector.shape_cast %126 : vector<8xf32> to vector<8x1xf32>
    %128 = vector.shape_cast %112 : vector<8x1xf32> to vector<1x8x1xf32>
    %cst_49 = arith.constant dense<0.000000e+00> : vector<1xf32>
    %129 = vector.multi_reduction <add>, %128, %cst_49 [1, 2] : vector<1x8x1xf32> to vector<1xf32>
    %130 = vector.shape_cast %129 : vector<1xf32> to vector<1x1x1xf32>
    %131 = vector.extract %130[0, 0, 0] : f32 from vector<1x1x1xf32>
    %132 = vector.shape_cast %127 : vector<8x1xf32> to vector<1x8x1xf32>
    %cst_50 = arith.constant dense<0.000000e+00> : vector<1xf32>
    %133 = vector.multi_reduction <add>, %132, %cst_50 [1, 2] : vector<1x8x1xf32> to vector<1xf32>
    %134 = vector.shape_cast %133 : vector<1xf32> to vector<1x1x1xf32>
    %135 = vector.extract %134[0, 0, 0] : f32 from vector<1x1x1xf32>
    %136 = arith.addf %131, %135 : f32
    %cst_51 = arith.constant 6.250000e-02 : f32
    %137 = arith.mulf %136, %cst_51 : f32
    %c0_52 = arith.constant 0 : index
    %138 = memref.load %arg11[%c0_52] : memref<1xf32, #tpu.memory_space<smem>>
    memref.store %137, %arg11[%c0_52] : memref<1xf32, #tpu.memory_space<smem>>
    return
  }
}

</mosaic_0001>

<llo_original>
// kernel: tpu_custom_call.1
$region0: #{tpu_custom_call.1}
  #allocation0 [shape = 'u32[]', space=smem, size = 0x4, offset = 0x4, fixed_abs, tag = 'smem constant byte address 0x4 - core index']
  #allocation1 [shape = 'u32[144,128]{1,0:T(1,128)}', space=vmem, size = 0x12000, scoped, tag = 'internal scratch']
  %s0 = inlined_call_operand.vmem [shape: s32[8,8], index: 0, kind: input, shape index: {}]
  %s1 = inlined_call_operand.vmem [shape: s32[8,8], index: 1, kind: input, shape index: {}]
  %s2 = inlined_call_operand.vmem [shape: s32[8,8], index: 2, kind: input, shape index: {}]
  %s3 = inlined_call_operand.vmem [shape: s32[8,8], index: 3, kind: input, shape index: {}]
  %s4 = inlined_call_operand.vmem [shape: f32[64,32], index: 4, kind: input, shape index: {}]
  %s5 = inlined_call_operand.vmem [shape: f32[32,32], index: 5, kind: input, shape index: {}]
  %s6 = inlined_call_operand.vmem [shape: f32[1,32], index: 6, kind: input, shape index: {}]
  %s7 = inlined_call_operand.vmem [shape: f32[32,32], index: 7, kind: input, shape index: {}]
  %s8 = inlined_call_operand.vmem [shape: f32[1,32], index: 8, kind: input, shape index: {}]
  %s9 = inlined_call_operand.vmem [shape: f32[1,32], index: 9, kind: input, shape index: {}]
  %s10 = inlined_call_operand.vmem [shape: f32[1,32], index: 10, kind: input, shape index: {}]
  %s11 = inlined_call_operand.hbm [shape: f32[1], index: 11, kind: output, shape index: {}]
  %s12 = sld [smem:[#allocation0]]
  $region54: #{tpu_custom_call.1} parent=0
    _
  %s14 = ssub.s32 1, %s12
  %s15 = scalar_select 0, %s14, %s12
  $region1: #{tpu_custom_call.1} parent=0
    #allocation2 [shape = 'u8[512]{0}', space=smem, size = 0x200, scoped, tag = 'output window, operand 0, single buffered']
    #allocation3 [shape = 's32[1]{0}', space=sflag, size = 0x4, scoped, tag = 'scoped memory for tpu_custom_call.1']
    %16 = vsyncpa [#allocation3], 0
    // Predicated region
    $region2: #{tpu_custom_call.1} parent=1 // pred_check
      _
    $region3: #{tpu_custom_call.1} parent=1 // pred_check_branch
      %18 = sbr.rel (0) target = $region5
    $region4: #{tpu_custom_call.1} parent=1 // pred_region
      _
    $region5: #{tpu_custom_call.1} parent=1 // pred_fallthru
      _
    // Predicated region
    $region6: #{tpu_custom_call.1} parent=1 // pred_check
      _
    $region7: #{tpu_custom_call.1} parent=1 // pred_check_branch
      %20 = sbr.rel (0) target = $region9
    $region8: #{tpu_custom_call.1} parent=1 // pred_region
      _
    $region9: #{tpu_custom_call.1} parent=1 // pred_fallthru
      _
    // Predicated region
    $region10: #{tpu_custom_call.1} parent=1 // pred_check
      _
    $region11: #{tpu_custom_call.1} parent=1 // pred_check_branch
      %22 = sbr.rel (0) target = $region13
    $region12: #{tpu_custom_call.1} parent=1 // pred_region
      _
    $region13: #{tpu_custom_call.1} parent=1 // pred_fallthru
      _
    // Predicated region
    $region14: #{tpu_custom_call.1} parent=1 // pred_check
      _
    $region15: #{tpu_custom_call.1} parent=1 // pred_check_branch
      %24 = sbr.rel (0) target = $region17
    $region16: #{tpu_custom_call.1} parent=1 // pred_region
      _
    $region17: #{tpu_custom_call.1} parent=1 // pred_fallthru
      _
    // Predicated region
    $region18: #{tpu_custom_call.1} parent=1 // pred_check
      _
    $region19: #{tpu_custom_call.1} parent=1 // pred_check_branch
      %26 = sbr.rel (0) target = $region21
    $region20: #{tpu_custom_call.1} parent=1 // pred_region
      _
    $region21: #{tpu_custom_call.1} parent=1 // pred_fallthru
      _
    // Predicated region
    $region22: #{tpu_custom_call.1} parent=1 // pred_check
      _
    $region23: #{tpu_custom_call.1} parent=1 // pred_check_branch
      %28 = sbr.rel (0) target = $region25
    $region24: #{tpu_custom_call.1} parent=1 // pred_region
      _
    $region25: #{tpu_custom_call.1} parent=1 // pred_fallthru
      _
    // Predicated region
    $region26: #{tpu_custom_call.1} parent=1 // pred_check
      _
    $region27: #{tpu_custom_call.1} parent=1 // pred_check_branch
      %30 = sbr.rel (0) target = $region29
    $region28: #{tpu_custom_call.1} parent=1 // pred_region
      _
    $region29: #{tpu_custom_call.1} parent=1 // pred_fallthru
      _
    // Predicated region
    $region30: #{tpu_custom_call.1} parent=1 // pred_check
      _
    $region31: #{tpu_custom_call.1} parent=1 // pred_check_branch
      %32 = sbr.rel (0) target = $region33
    $region32: #{tpu_custom_call.1} parent=1 // pred_region
      _
    $region33: #{tpu_custom_call.1} parent=1 // pred_fallthru
      _
    // Predicated region
    $region34: #{tpu_custom_call.1} parent=1 // pred_check
      _
    $region35: #{tpu_custom_call.1} parent=1 // pred_check_branch
      %34 = sbr.rel (0) target = $region37
    $region36: #{tpu_custom_call.1} parent=1 // pred_region
      _
    $region37: #{tpu_custom_call.1} parent=1 // pred_fallthru
      _
    // Predicated region
    $region38: #{tpu_custom_call.1} parent=1 // pred_check
      _
    $region39: #{tpu_custom_call.1} parent=1 // pred_check_branch
      %36 = sbr.rel (0) target = $region41
    $region40: #{tpu_custom_call.1} parent=1 // pred_region
      _
    $region41: #{tpu_custom_call.1} parent=1 // pred_fallthru
      _
    // Predicated region
    $region42: #{tpu_custom_call.1} parent=1 // pred_check
      _
    $region43: #{tpu_custom_call.1} parent=1 // pred_check_branch
      %38 = sbr.rel (0) target = $region45
    $region44: #{tpu_custom_call.1} parent=1 // pred_region
      _
    $region45: #{tpu_custom_call.1} parent=1 // pred_fallthru
      _
    %v39 = vld [vmem:[%s0] sm:$0xff]
    %v40 = vld [vmem:[%s1] sm:$0xff]
    %v41 = vld [vmem:[%s2] sm:$0xff]
    %v42 = vld [vmem:[%s3] sm:$0xff]
    %v43 = vcvt.s32.f32 %v41
    %v44 = vcvt.s32.f32 %v42
    %v45 = vlaneseq
    %v46 = vand.u32 %v45, 127
    %v47 = vlaneseq
    %v48 = vshrl.u32 %v47, 7
    %v49 = vsub.s32 0, %v48
    %v50 = vrot.slane %v39, %v49
    %52 = vbcast.lane.b32.xlu0 %v50, 256
    %v53 = vpop.permute.xlu0 %52
    %v54 = vlaneseq
    %v55 = vshrl.u32 %v54, 7
    %v56 = vsub.s32 1, %v55
    %v57 = vrot.slane %v39, %v56
    %59 = vbcast.lane.b32.xlu0 %v57, 256
    %v60 = vpop.permute.xlu0 %59
    %v61 = vlaneseq
    %v62 = vshrl.u32 %v61, 7
    %v63 = vsub.s32 2, %v62
    %v64 = vrot.slane %v39, %v63
    %66 = vbcast.lane.b32.xlu0 %v64, 256
    %v67 = vpop.permute.xlu0 %66
    %v68 = vlaneseq
    %v69 = vshrl.u32 %v68, 7
    %v70 = vsub.s32 3, %v69
    %v71 = vrot.slane %v39, %v70
    %73 = vbcast.lane.b32.xlu0 %v71, 256
    %v74 = vpop.permute.xlu0 %73
    %v75 = vlaneseq
    %v76 = vshrl.u32 %v75, 7
    %v77 = vsub.s32 4, %v76
    %v78 = vrot.slane %v39, %v77
    %80 = vbcast.lane.b32.xlu0 %v78, 256
    %v81 = vpop.permute.xlu0 %80
    %v82 = vlaneseq
    %v83 = vshrl.u32 %v82, 7
    %v84 = vsub.s32 5, %v83
    %v85 = vrot.slane %v39, %v84
    %87 = vbcast.lane.b32.xlu0 %v85, 256
    %v88 = vpop.permute.xlu0 %87
    %v89 = vlaneseq
    %v90 = vshrl.u32 %v89, 7
    %v91 = vsub.s32 6, %v90
    %v92 = vrot.slane %v39, %v91
    %94 = vbcast.lane.b32.xlu0 %v92, 256
    %v95 = vpop.permute.xlu0 %94
    %v96 = vlaneseq
    %v97 = vshrl.u32 %v96, 7
    %v98 = vsub.s32 7, %v97
    %v99 = vrot.slane %v39, %v98
    %101 = vbcast.lane.b32.xlu0 %v99, 256
    %v102 = vpop.permute.xlu0 %101
    %v103 = vlaneseq
    %v104 = vshrl.u32 %v103, 7
    %v105 = vsub.s32 0, %v104
    %v106 = vrot.slane %v40, %v105
    %108 = vbcast.lane.b32.xlu0 %v106, 256
    %v109 = vpop.permute.xlu0 %108
    %v110 = vlaneseq
    %v111 = vshrl.u32 %v110, 7
    %v112 = vsub.s32 1, %v111
    %v113 = vrot.slane %v40, %v112
    %115 = vbcast.lane.b32.xlu0 %v113, 256
    %v116 = vpop.permute.xlu0 %115
    %v117 = vlaneseq
    %v118 = vshrl.u32 %v117, 7
    %v119 = vsub.s32 2, %v118
    %v120 = vrot.slane %v40, %v119
    %122 = vbcast.lane.b32.xlu0 %v120, 256
    %v123 = vpop.permute.xlu0 %122
    %v124 = vlaneseq
    %v125 = vshrl.u32 %v124, 7
    %v126 = vsub.s32 3, %v125
    %v127 = vrot.slane %v40, %v126
    %129 = vbcast.lane.b32.xlu0 %v127, 256
    %v130 = vpop.permute.xlu0 %129
    %v131 = vlaneseq
    %v132 = vshrl.u32 %v131, 7
    %v133 = vsub.s32 4, %v132
    %v134 = vrot.slane %v40, %v133
    %136 = vbcast.lane.b32.xlu0 %v134, 256
    %v137 = vpop.permute.xlu0 %136
    %v138 = vlaneseq
    %v139 = vshrl.u32 %v138, 7
    %v140 = vsub.s32 5, %v139
    %v141 = vrot.slane %v40, %v140
    %143 = vbcast.lane.b32.xlu0 %v141, 256
    %v144 = vpop.permute.xlu0 %143
    %v145 = vlaneseq
    %v146 = vshrl.u32 %v145, 7
    %v147 = vsub.s32 6, %v146
    %v148 = vrot.slane %v40, %v147
    %150 = vbcast.lane.b32.xlu0 %v148, 256
    %v151 = vpop.permute.xlu0 %150
    %v152 = vlaneseq
    %v153 = vshrl.u32 %v152, 7
    %v154 = vsub.s32 7, %v153
    %v155 = vrot.slane %v40, %v154
    %157 = vbcast.lane.b32.xlu0 %v155, 256
    %v158 = vpop.permute.xlu0 %157
    %vm159 = vcmp.eq.s32.totalorder %v53, %v46
    %vm160 = vcmp.eq.s32.totalorder %v60, %v46
    %vm161 = vcmp.eq.s32.totalorder %v67, %v46
    %vm162 = vcmp.eq.s32.totalorder %v74, %v46
    %vm163 = vcmp.eq.s32.totalorder %v81, %v46
    %vm164 = vcmp.eq.s32.totalorder %v88, %v46
    %vm165 = vcmp.eq.s32.totalorder %v95, %v46
    %vm166 = vcmp.eq.s32.totalorder %v102, %v46
    %vm167 = vcmp.eq.s32.totalorder %v109, %v46
    %vm168 = vcmp.eq.s32.totalorder %v116, %v46
    %vm169 = vcmp.eq.s32.totalorder %v123, %v46
    %vm170 = vcmp.eq.s32.totalorder %v130, %v46
    %vm171 = vcmp.eq.s32.totalorder %v137, %v46
    %vm172 = vcmp.eq.s32.totalorder %v144, %v46
    %vm173 = vcmp.eq.s32.totalorder %v151, %v46
    %vm174 = vcmp.eq.s32.totalorder %v158, %v46
    %v175 = vsel %vm159, 1, 0
    %v176 = vsel %vm160, 1, 0
    %v177 = vsel %vm161, 1, 0
    %v178 = vsel %vm162, 1, 0
    %v179 = vsel %vm163, 1, 0
    %v180 = vsel %vm164, 1, 0
    %v181 = vsel %vm165, 1, 0
    %v182 = vsel %vm166, 1, 0
    %v183 = vsel %vm167, 1, 0
    %v184 = vsel %vm168, 1, 0
    %v185 = vsel %vm169, 1, 0
    %v186 = vsel %vm170, 1, 0
    %v187 = vsel %vm171, 1, 0
    %v188 = vsel %vm172, 1, 0
    %v189 = vsel %vm173, 1, 0
    %v190 = vsel %vm174, 1, 0
    %v191 = vcvt.s32.f32 %v175
    %v192 = vcvt.s32.f32 %v176
    %v193 = vcvt.s32.f32 %v177
    %v194 = vcvt.s32.f32 %v178
    %v195 = vcvt.s32.f32 %v179
    %v196 = vcvt.s32.f32 %v180
    %v197 = vcvt.s32.f32 %v181
    %v198 = vcvt.s32.f32 %v182
    %v199 = vcvt.s32.f32 %v183
    %v200 = vcvt.s32.f32 %v184
    %v201 = vcvt.s32.f32 %v185
    %v202 = vcvt.s32.f32 %v186
    %v203 = vcvt.s32.f32 %v187
    %v204 = vcvt.s32.f32 %v188
    %v205 = vcvt.s32.f32 %v189
    %v206 = vcvt.s32.f32 %v190
    %v207 = vlaneseq
    %v208 = vshrl.u32 %v207, 7
    %v209 = vsub.s32 0, %v208
    %v210 = vrot.slane %v43, %v209
    %212 = vbcast.lane.b32.xlu0 %v210, 256
    %v213 = vpop.permute.xlu0 %212
    %v214 = vlaneseq
    %v215 = vshrl.u32 %v214, 7
    %v216 = vsub.s32 1, %v215
    %v217 = vrot.slane %v43, %v216
    %219 = vbcast.lane.b32.xlu0 %v217, 256
    %v220 = vpop.permute.xlu0 %219
    %v221 = vlaneseq
    %v222 = vshrl.u32 %v221, 7
    %v223 = vsub.s32 2, %v222
    %v224 = vrot.slane %v43, %v223
    %226 = vbcast.lane.b32.xlu0 %v224, 256
    %v227 = vpop.permute.xlu0 %226
    %v228 = vlaneseq
    %v229 = vshrl.u32 %v228, 7
    %v230 = vsub.s32 3, %v229
    %v231 = vrot.slane %v43, %v230
    %233 = vbcast.lane.b32.xlu0 %v231, 256
    %v234 = vpop.permute.xlu0 %233
    %v235 = vlaneseq
    %v236 = vshrl.u32 %v235, 7
    %v237 = vsub.s32 4, %v236
    %v238 = vrot.slane %v43, %v237
    %240 = vbcast.lane.b32.xlu0 %v238, 256
    %v241 = vpop.permute.xlu0 %240
    %v242 = vlaneseq
    %v243 = vshrl.u32 %v242, 7
    %v244 = vsub.s32 5, %v243
    %v245 = vrot.slane %v43, %v244
    %247 = vbcast.lane.b32.xlu0 %v245, 256
    %v248 = vpop.permute.xlu0 %247
    %v249 = vlaneseq
    %v250 = vshrl.u32 %v249, 7
    %v251 = vsub.s32 6, %v250
    %v252 = vrot.slane %v43, %v251
    %254 = vbcast.lane.b32.xlu0 %v252, 256
    %v255 = vpop.permute.xlu0 %254
    %v256 = vlaneseq
    %v257 = vshrl.u32 %v256, 7
    %v258 = vsub.s32 7, %v257
    %v259 = vrot.slane %v43, %v258
    %261 = vbcast.lane.b32.xlu0 %v259, 256
    %v262 = vpop.permute.xlu0 %261
    %v263 = vlaneseq
    %v264 = vshrl.u32 %v263, 7
    %v265 = vsub.s32 0, %v264
    %v266 = vrot.slane %v44, %v265
    %268 = vbcast.lane.b32.xlu0 %v266, 256
    %v269 = vpop.permute.xlu0 %268
    %v270 = vlaneseq
    %v271 = vshrl.u32 %v270, 7
    %v272 = vsub.s32 1, %v271
    %v273 = vrot.slane %v44, %v272
    %275 = vbcast.lane.b32.xlu0 %v273, 256
    %v276 = vpop.permute.xlu0 %275
    %v277 = vlaneseq
    %v278 = vshrl.u32 %v277, 7
    %v279 = vsub.s32 2, %v278
    %v280 = vrot.slane %v44, %v279
    %282 = vbcast.lane.b32.xlu0 %v280, 256
    %v283 = vpop.permute.xlu0 %282
    %v284 = vlaneseq
    %v285 = vshrl.u32 %v284, 7
    %v286 = vsub.s32 3, %v285
    %v287 = vrot.slane %v44, %v286
    %289 = vbcast.lane.b32.xlu0 %v287, 256
    %v290 = vpop.permute.xlu0 %289
    %v291 = vlaneseq
    %v292 = vshrl.u32 %v291, 7
    %v293 = vsub.s32 4, %v292
    %v294 = vrot.slane %v44, %v293
    %296 = vbcast.lane.b32.xlu0 %v294, 256
    %v297 = vpop.permute.xlu0 %296
    %v298 = vlaneseq
    %v299 = vshrl.u32 %v298, 7
    %v300 = vsub.s32 5, %v299
    %v301 = vrot.slane %v44, %v300
    %303 = vbcast.lane.b32.xlu0 %v301, 256
    %v304 = vpop.permute.xlu0 %303
    %v305 = vlaneseq
    %v306 = vshrl.u32 %v305, 7
    %v307 = vsub.s32 6, %v306
    %v308 = vrot.slane %v44, %v307
    %310 = vbcast.lane.b32.xlu0 %v308, 256
    %v311 = vpop.permute.xlu0 %310
    %v312 = vlaneseq
    %v313 = vshrl.u32 %v312, 7
    %v314 = vsub.s32 7, %v313
    %v315 = vrot.slane %v44, %v314
    %317 = vbcast.lane.b32.xlu0 %v315, 256
    %v318 = vpop.permute.xlu0 %317
    %v319 = vmul.f32 %v191, %v213
    %v320 = vmul.f32 %v192, %v220
    %v321 = vmul.f32 %v193, %v227
    %v322 = vmul.f32 %v194, %v234
    %v323 = vmul.f32 %v195, %v241
    %v324 = vmul.f32 %v196, %v248
    %v325 = vmul.f32 %v197, %v255
    %v326 = vmul.f32 %v198, %v262
    %v327 = vmul.f32 %v199, %v269
    %v328 = vmul.f32 %v200, %v276
    %v329 = vmul.f32 %v201, %v283
    %v330 = vmul.f32 %v202, %v290
    %v331 = vmul.f32 %v203, %v297
    %v332 = vmul.f32 %v204, %v304
    %v333 = vmul.f32 %v205, %v311
    %v334 = vmul.f32 %v206, %v318
    %vm335 = vcmask 523264
    %v336 = vsel %vm335, %v319, 0.0
    %v337 = vrot.slane %v336, 4
    %v338 = vadd.f32 %v336, %v337
    %v339 = vrot.slane %v338, 2
    %v340 = vadd.f32 %v338, %v339
    %v341 = vrot.slane %v340, 1
    %v342 = vadd.f32 %v340, %v341
    %v343 = vsel %vm335, %v320, 0.0
    %v344 = vrot.slane %v343, 4
    %v345 = vadd.f32 %v343, %v344
    %v346 = vrot.slane %v345, 2
    %v347 = vadd.f32 %v345, %v346
    %v348 = vrot.slane %v347, 1
    %v349 = vadd.f32 %v347, %v348
    %v350 = vsel %vm335, %v321, 0.0
    %v351 = vrot.slane %v350, 4
    %v352 = vadd.f32 %v350, %v351
    %v353 = vrot.slane %v352, 2
    %v354 = vadd.f32 %v352, %v353
    %v355 = vrot.slane %v354, 1
    %v356 = vadd.f32 %v354, %v355
    %v357 = vsel %vm335, %v322, 0.0
    %v358 = vrot.slane %v357, 4
    %v359 = vadd.f32 %v357, %v358
    %v360 = vrot.slane %v359, 2
    %v361 = vadd.f32 %v359, %v360
    %v362 = vrot.slane %v361, 1
    %v363 = vadd.f32 %v361, %v362
    %v364 = vsel %vm335, %v323, 0.0
    %v365 = vrot.slane %v364, 4
    %v366 = vadd.f32 %v364, %v365
    %v367 = vrot.slane %v366, 2
    %v368 = vadd.f32 %v366, %v367
    %v369 = vrot.slane %v368, 1
    %v370 = vadd.f32 %v368, %v369
    %v371 = vsel %vm335, %v324, 0.0
    %v372 = vrot.slane %v371, 4
    %v373 = vadd.f32 %v371, %v372
    %v374 = vrot.slane %v373, 2
    %v375 = vadd.f32 %v373, %v374
    %v376 = vrot.slane %v375, 1
    %v377 = vadd.f32 %v375, %v376
    %v378 = vsel %vm335, %v325, 0.0
    %v379 = vrot.slane %v378, 4
    %v380 = vadd.f32 %v378, %v379
    %v381 = vrot.slane %v380, 2
    %v382 = vadd.f32 %v380, %v381
    %v383 = vrot.slane %v382, 1
    %v384 = vadd.f32 %v382, %v383
    %v385 = vsel %vm335, %v326, 0.0
    %v386 = vrot.slane %v385, 4
    %v387 = vadd.f32 %v385, %v386
    %v388 = vrot.slane %v387, 2
    %v389 = vadd.f32 %v387, %v388
    %v390 = vrot.slane %v389, 1
    %v391 = vadd.f32 %v389, %v390
    %v392 = vsel %vm335, %v327, 0.0
    %v393 = vrot.slane %v392, 4
    %v394 = vadd.f32 %v392, %v393
    %v395 = vrot.slane %v394, 2
    %v396 = vadd.f32 %v394, %v395
    %v397 = vrot.slane %v396, 1
    %v398 = vadd.f32 %v396, %v397
    %v399 = vsel %vm335, %v328, 0.0
    %v400 = vrot.slane %v399, 4
    %v401 = vadd.f32 %v399, %v400
    %v402 = vrot.slane %v401, 2
    %v403 = vadd.f32 %v401, %v402
    %v404 = vrot.slane %v403, 1
    %v405 = vadd.f32 %v403, %v404
    %v406 = vsel %vm335, %v329, 0.0
    %v407 = vrot.slane %v406, 4
    %v408 = vadd.f32 %v406, %v407
    %v409 = vrot.slane %v408, 2
    %v410 = vadd.f32 %v408, %v409
    %v411 = vrot.slane %v410, 1
    %v412 = vadd.f32 %v410, %v411
    %v413 = vsel %vm335, %v330, 0.0
    %v414 = vrot.slane %v413, 4
    %v415 = vadd.f32 %v413, %v414
    %v416 = vrot.slane %v415, 2
    %v417 = vadd.f32 %v415, %v416
    %v418 = vrot.slane %v417, 1
    %v419 = vadd.f32 %v417, %v418
    %v420 = vsel %vm335, %v331, 0.0
    %v421 = vrot.slane %v420, 4
    %v422 = vadd.f32 %v420, %v421
    %v423 = vrot.slane %v422, 2
    %v424 = vadd.f32 %v422, %v423
    %v425 = vrot.slane %v424, 1
    %v426 = vadd.f32 %v424, %v425
    %v427 = vsel %vm335, %v332, 0.0
    %v428 = vrot.slane %v427, 4
    %v429 = vadd.f32 %v427, %v428
    %v430 = vrot.slane %v429, 2
    %v431 = vadd.f32 %v429, %v430
    %v432 = vrot.slane %v431, 1
    %v433 = vadd.f32 %v431, %v432
    %v434 = vsel %vm335, %v333, 0.0
    %v435 = vrot.slane %v434, 4
    %v436 = vadd.f32 %v434, %v435
    %v437 = vrot.slane %v436, 2
    %v438 = vadd.f32 %v436, %v437
    %v439 = vrot.slane %v438, 1
    %v440 = vadd.f32 %v438, %v439
    %v441 = vsel %vm335, %v334, 0.0
    %v442 = vrot.slane %v441, 4
    %v443 = vadd.f32 %v441, %v442
    %v444 = vrot.slane %v443, 2
    %v445 = vadd.f32 %v443, %v444
    %v446 = vrot.slane %v445, 1
    %v447 = vadd.f32 %v445, %v446
    %vm448 = vcmask 64512
    %v449 = vsel %vm448, %v43, 0.0
    %450 = vadd.xlane.f32.xlu0 %v449
    %v451 = vpop.xlane.xlu0 %450
    %v452 = vsel %vm448, %v44, 0.0
    %453 = vadd.xlane.f32.xlu0 %v452
    %v454 = vpop.xlane.xlu0 %453
    %v455 = vld [vmem:[%s4] sm:$0xff]
    %v456 = vld [vmem:[%s4 + $0x8] sm:$0xff]
    %v457 = vld [vmem:[%s4 + $0x10] sm:$0xff]
    %v458 = vld [vmem:[%s4 + $0x18] sm:$0xff]
    %v459 = vld [vmem:[%s4 + $0x20] sm:$0xff]
    %v460 = vld [vmem:[%s4 + $0x28] sm:$0xff]
    %v461 = vld [vmem:[%s4 + $0x30] sm:$0xff]
    %v462 = vld [vmem:[%s4 + $0x38] sm:$0xff]
    %vm479 = vcmask 1041409
    %v480 = vsel %vm479, %v349, %v342
    %vm481 = vcmask 1042434
    %v482 = vsel %vm481, %v356, %v480
    %vm483 = vcmask 1043459
    %v484 = vsel %vm483, %v363, %v482
    %vm485 = vcmask 1044484
    %v486 = vsel %vm485, %v370, %v484
    %vm487 = vcmask 1045509
    %v488 = vsel %vm487, %v377, %v486
    %vm489 = vcmask 1046534
    %v490 = vsel %vm489, %v384, %v488
    %vm491 = vcmask 1047559
    %v492 = vsel %vm491, %v391, %v490
    %v493 = vsel %vm479, %v405, %v398
    %v494 = vsel %vm481, %v412, %v493
    %v495 = vsel %vm483, %v419, %v494
    %v496 = vsel %vm485, %v426, %v495
    %v497 = vsel %vm487, %v433, %v496
    %v498 = vsel %vm489, %v440, %v497
    %v499 = vsel %vm491, %v447, %v498
    %v500 = vsel %vm335, %v492, 0
    %v502 = vsel %vm335, %v499, 0
    %504 = vmatprep.subr.mxu0 0.0
    %505 = vmatpush1.msra.mxu0 %v455
    %506 = vmatprep.subr.mxu0 0.0
    %507 = vmatpush1.msra.mxu0 %v456
    %508 = vmatprep.subr.mxu0 0.0
    %509 = vmatpush1.msra.mxu0 %v457
    %510 = vmatprep.subr.mxu0 0.0
    %511 = vmatpush1.msra.mxu0 %v458
    %512 = vmatprep.subr.mxu0 0.0
    %513 = vmatpush1.msra.mxu0 %v459
    %514 = vmatprep.subr.mxu0 0.0
    %515 = vmatpush1.msra.mxu0 %v460
    %516 = vmatprep.subr.mxu0 0.0
    %517 = vmatpush1.msra.mxu0 %v461
    %518 = vmatprep.subr.mxu0 0.0
    %519 = vmatpush1.msra.mxu0 %v462
    %520 = vmatprep.subr.mxu0 0.0
    %521 = vmatpush1.msra.mxu0 0.0
    %522 = vmatprep.subr.mxu0 0.0
    %523 = vmatpush1.msra.mxu0 0.0
    %524 = vmatprep.subr.mxu0 0.0
    %525 = vmatpush1.msra.mxu0 0.0
    %526 = vmatprep.subr.mxu0 0.0
    %527 = vmatpush1.msra.mxu0 0.0
    %528 = vmatprep.subr.mxu0 0.0
    %529 = vmatpush1.msra.mxu0 0.0
    %530 = vmatprep.subr.mxu0 0.0
    %531 = vmatpush1.msra.mxu0 0.0
    %532 = vmatprep.subr.mxu0 0.0
    %533 = vmatpush1.msra.mxu0 0.0
    %534 = vmatprep.subr.mxu0 0.0
    %535 = vmatpush1.msra.mxu0 0.0
    %536 = vmatprep.subr.mxu0 0.0
    %537 = vmatpush1.msra.mxu0 0.0
    %538 = vmatprep.subr.mxu0 0.0
    %539 = vmatpush1.msra.mxu0 0.0
    %540 = vmatprep.subr.mxu0 0.0
    %541 = vmatpush1.msra.mxu0 0.0
    %542 = vmatprep.subr.mxu0 0.0
    %543 = vmatpush1.msra.mxu0 0.0
    %544 = vmatprep.subr.mxu0 0.0
    %545 = vmatpush1.msra.mxu0 0.0
    %546 = vmatprep.subr.mxu0 0.0
    %547 = vmatpush1.msra.mxu0 0.0
    %548 = vmatprep.subr.mxu0 0.0
    %549 = vmatpush1.msra.mxu0 0.0
    %550 = vmatprep.subr.mxu0 0.0
    %551 = vmatpush1.msra.mxu0 0.0
    %552 = vmatprep.subr.mxu0 0.0
    %553 = vmatpush1.msra.mxu0 0.0
    %554 = vmatprep.subr.mxu0 0.0
    %555 = vmatpush1.msra.mxu0 0.0
    %556 = vmatprep.subr.mxu0 0.0
    %557 = vmatpush1.msra.mxu0 0.0
    %558 = vmatprep.subr.mxu0 0.0
    %559 = vmatpush1.msra.mxu0 0.0
    %560 = vmatprep.subr.mxu0 0.0
    %561 = vmatpush1.msra.mxu0 0.0
    %562 = vmatprep.subr.mxu0 0.0
    %563 = vmatpush1.msra.mxu0 0.0
    %564 = vmatprep.subr.mxu0 0.0
    %565 = vmatpush1.msra.mxu0 0.0
    %566 = vmatprep.subr.mxu0 0.0
    %567 = vmatpush1.msra.mxu0 0.0
    %568 = vmatprep.mubr.f32.mxu0 0.0
    %569 = vmatmul.mubr.f32.gmra.mrb[0].mxu0 %v500
    %v570 = vpop.f32.mrb[0].mxu0
    %v571 = vadd.f32 0.0, %v570
    %v572 = vpop.f32.mrb[0].mxu0
    %573 = vmatprep.mubr.f32.mxu0 0.0
    %574 = vmatmul.mubr.f32.gmra.mrb[0].mxu0 %v502
    %v575 = vpop.f32.mrb[0].mxu0
    %v576 = vadd.f32 0.0, %v575
    %v577 = vpop.f32.mrb[0].mxu0
    %578 = vdwg.mxu0
    %v579 = vrcp.pop %v451
    %v580 = vmul.f32 %v571, %v579
    %v581 = vrcp.pop %v454
    %v582 = vmul.f32 %v576, %v581
    %v583 = vld [vmem:[%s5] sm:$0xff]
    %v584 = vld [vmem:[%s5 + $0x8] sm:$0xff]
    %v585 = vld [vmem:[%s5 + $0x10] sm:$0xff]
    %v586 = vld [vmem:[%s5 + $0x18] sm:$0xff]
    %v587 = vld [vmem:[%s6] sm:$0x1]
    %v589 = vlaneseq
    %v590 = vshrl.u32 %v589, 7
    %v591 = vsub.s32 0, %v590
    %v592 = vrot.slane %v587, %v591
    %vm594 = vcmask 261120
    %v596 = vsel %vm594, %v580, 0
    %v599 = vsel %vm594, %v582, 0
    %601 = vmatprep.subr.mxu0 0.0
    %602 = vmatpush1.msra.mxu0 %v583
    %603 = vmatprep.subr.mxu0 0.0
    %604 = vmatpush1.msra.mxu0 %v584
    %605 = vmatprep.subr.mxu0 0.0
    %606 = vmatpush1.msra.mxu0 %v585
    %607 = vmatprep.subr.mxu0 0.0
    %608 = vmatpush1.msra.mxu0 %v586
    %609 = vmatprep.subr.mxu0 0.0
    %610 = vmatpush1.msra.mxu0 0.0
    %611 = vmatprep.subr.mxu0 0.0
    %612 = vmatpush1.msra.mxu0 0.0
    %613 = vmatprep.subr.mxu0 0.0
    %614 = vmatpush1.msra.mxu0 0.0
    %615 = vmatprep.subr.mxu0 0.0
    %616 = vmatpush1.msra.mxu0 0.0
    %617 = vmatprep.subr.mxu0 0.0
    %618 = vmatpush1.msra.mxu0 0.0
    %619 = vmatprep.subr.mxu0 0.0
    %620 = vmatpush1.msra.mxu0 0.0
    %621 = vmatprep.subr.mxu0 0.0
    %622 = vmatpush1.msra.mxu0 0.0
    %623 = vmatprep.subr.mxu0 0.0
    %624 = vmatpush1.msra.mxu0 0.0
    %625 = vmatprep.subr.mxu0 0.0
    %626 = vmatpush1.msra.mxu0 0.0
    %627 = vmatprep.subr.mxu0 0.0
    %628 = vmatpush1.msra.mxu0 0.0
    %629 = vmatprep.subr.mxu0 0.0
    %630 = vmatpush1.msra.mxu0 0.0
    %631 = vmatprep.subr.mxu0 0.0
    %632 = vmatpush1.msra.mxu0 0.0
    %633 = vmatprep.subr.mxu0 0.0
    %634 = vmatpush1.msra.mxu0 0.0
    %635 = vmatprep.subr.mxu0 0.0
    %636 = vmatpush1.msra.mxu0 0.0
    %637 = vmatprep.subr.mxu0 0.0
    %638 = vmatpush1.msra.mxu0 0.0
    %639 = vmatprep.subr.mxu0 0.0
    %640 = vmatpush1.msra.mxu0 0.0
    %641 = vmatprep.subr.mxu0 0.0
    %642 = vmatpush1.msra.mxu0 0.0
    %643 = vmatprep.subr.mxu0 0.0
    %644 = vmatpush1.msra.mxu0 0.0
    %645 = vmatprep.subr.mxu0 0.0
    %646 = vmatpush1.msra.mxu0 0.0
    %647 = vmatprep.subr.mxu0 0.0
    %648 = vmatpush1.msra.mxu0 0.0
    %649 = vmatprep.subr.mxu0 0.0
    %650 = vmatpush1.msra.mxu0 0.0
    %651 = vmatprep.subr.mxu0 0.0
    %652 = vmatpush1.msra.mxu0 0.0
    %653 = vmatprep.subr.mxu0 0.0
    %654 = vmatpush1.msra.mxu0 0.0
    %655 = vmatprep.subr.mxu0 0.0
    %656 = vmatpush1.msra.mxu0 0.0
    %657 = vmatprep.subr.mxu0 0.0
    %658 = vmatpush1.msra.mxu0 0.0
    %659 = vmatprep.subr.mxu0 0.0
    %660 = vmatpush1.msra.mxu0 0.0
    %661 = vmatprep.subr.mxu0 0.0
    %662 = vmatpush1.msra.mxu0 0.0
    %663 = vmatprep.subr.mxu0 0.0
    %664 = vmatpush1.msra.mxu0 0.0
    %665 = vmatprep.mubr.f32.mxu0 0.0
    %666 = vmatmul.mubr.f32.gmra.mrb[0].mxu0 %v596
    %v667 = vpop.f32.mrb[0].mxu0
    %v668 = vadd.f32 %v592, %v667
    %v669 = vpop.f32.mrb[0].mxu0
    %670 = vmatprep.mubr.f32.mxu0 0.0
    %671 = vmatmul.mubr.f32.gmra.mrb[0].mxu0 %v599
    %v672 = vpop.f32.mrb[0].mxu0
    %v673 = vadd.f32 %v592, %v672
    %v674 = vpop.f32.mrb[0].mxu0
    %675 = vdwg.mxu0
    %v676 = vmul.f32 %v668, 0.5
    %v677 = vmul.f32 %v673, 0.5
    %v678 = vmul.f32 %v668, 0.70710677
    %v679 = vmul.f32 %v673, 0.70710677
    %v680 = verf.f32.pop %v678
    %v681 = verf.f32.pop %v679
    %v682 = vadd.f32 %v680, 1.0
    %v683 = vadd.f32 %v681, 1.0
    %v684 = vmul.f32 %v676, %v682
    %v685 = vmul.f32 %v677, %v683
    %v686 = vld [vmem:[%s7] sm:$0xff]
    %v687 = vld [vmem:[%s7 + $0x8] sm:$0xff]
    %v688 = vld [vmem:[%s7 + $0x10] sm:$0xff]
    %v689 = vld [vmem:[%s7 + $0x18] sm:$0xff]
    %v690 = vld [vmem:[%s8] sm:$0x1]
    %v692 = vlaneseq
    %v693 = vshrl.u32 %v692, 7
    %v694 = vsub.s32 0, %v693
    %v695 = vrot.slane %v690, %v694
    %v698 = vsel %vm594, %v684, 0
    %v701 = vsel %vm594, %v685, 0
    %703 = vmatprep.subr.mxu0 0.0
    %704 = vmatpush1.msra.mxu0 %v686
    %705 = vmatprep.subr.mxu0 0.0
    %706 = vmatpush1.msra.mxu0 %v687
    %707 = vmatprep.subr.mxu0 0.0
    %708 = vmatpush1.msra.mxu0 %v688
    %709 = vmatprep.subr.mxu0 0.0
    %710 = vmatpush1.msra.mxu0 %v689
    %711 = vmatprep.subr.mxu0 0.0
    %712 = vmatpush1.msra.mxu0 0.0
    %713 = vmatprep.subr.mxu0 0.0
    %714 = vmatpush1.msra.mxu0 0.0
    %715 = vmatprep.subr.mxu0 0.0
    %716 = vmatpush1.msra.mxu0 0.0
    %717 = vmatprep.subr.mxu0 0.0
    %718 = vmatpush1.msra.mxu0 0.0
    %719 = vmatprep.subr.mxu0 0.0
    %720 = vmatpush1.msra.mxu0 0.0
    %721 = vmatprep.subr.mxu0 0.0
    %722 = vmatpush1.msra.mxu0 0.0
    %723 = vmatprep.subr.mxu0 0.0
    %724 = vmatpush1.msra.mxu0 0.0
    %725 = vmatprep.subr.mxu0 0.0
    %726 = vmatpush1.msra.mxu0 0.0
    %727 = vmatprep.subr.mxu0 0.0
    %728 = vmatpush1.msra.mxu0 0.0
    %729 = vmatprep.subr.mxu0 0.0
    %730 = vmatpush1.msra.mxu0 0.0
    %731 = vmatprep.subr.mxu0 0.0
    %732 = vmatpush1.msra.mxu0 0.0
    %733 = vmatprep.subr.mxu0 0.0
    %734 = vmatpush1.msra.mxu0 0.0
    %735 = vmatprep.subr.mxu0 0.0
    %736 = vmatpush1.msra.mxu0 0.0
    %737 = vmatprep.subr.mxu0 0.0
    %738 = vmatpush1.msra.mxu0 0.0
    %739 = vmatprep.subr.mxu0 0.0
    %740 = vmatpush1.msra.mxu0 0.0
    %741 = vmatprep.subr.mxu0 0.0
    %742 = vmatpush1.msra.mxu0 0.0
    %743 = vmatprep.subr.mxu0 0.0
    %744 = vmatpush1.msra.mxu0 0.0
    %745 = vmatprep.subr.mxu0 0.0
    %746 = vmatpush1.msra.mxu0 0.0
    %747 = vmatprep.subr.mxu0 0.0
    %748 = vmatpush1.msra.mxu0 0.0
    %749 = vmatprep.subr.mxu0 0.0
    %750 = vmatpush1.msra.mxu0 0.0
    %751 = vmatprep.subr.mxu0 0.0
    %752 = vmatpush1.msra.mxu0 0.0
    %753 = vmatprep.subr.mxu0 0.0
    %754 = vmatpush1.msra.mxu0 0.0
    %755 = vmatprep.subr.mxu0 0.0
    %756 = vmatpush1.msra.mxu0 0.0
    %757 = vmatprep.subr.mxu0 0.0
    %758 = vmatpush1.msra.mxu0 0.0
    %759 = vmatprep.subr.mxu0 0.0
    %760 = vmatpush1.msra.mxu0 0.0
    %761 = vmatprep.subr.mxu0 0.0
    %762 = vmatpush1.msra.mxu0 0.0
    %763 = vmatprep.subr.mxu0 0.0
    %764 = vmatpush1.msra.mxu0 0.0
    %765 = vmatprep.subr.mxu0 0.0
    %766 = vmatpush1.msra.mxu0 0.0
    %767 = vmatprep.mubr.f32.mxu0 0.0
    %768 = vmatmul.mubr.f32.gmra.mrb[0].mxu0 %v698
    %v769 = vpop.f32.mrb[0].mxu0
    %v770 = vadd.f32 %v695, %v769
    %v771 = vpop.f32.mrb[0].mxu0
    %772 = vmatprep.mubr.f32.mxu0 0.0
    %773 = vmatmul.mubr.f32.gmra.mrb[0].mxu0 %v701
    %v774 = vpop.f32.mrb[0].mxu0
    %v775 = vadd.f32 %v695, %v774
    %v776 = vpop.f32.mrb[0].mxu0
    %777 = vdwg.mxu0
    %v778 = vadd.f32 %v770, %v668
    %v779 = vadd.f32 %v775, %v673
    %v780 = vsel %vm594, %v778, 0.0
    %781 = vadd.xlane.f32.xlu0 %v780
    %v782 = vpop.xlane.xlu0 %781
    %v783 = vsel %vm594, %v779, 0.0
    %784 = vadd.xlane.f32.xlu0 %v783
    %v785 = vpop.xlane.xlu0 %784
    %v786 = vrcp.pop 32.0
    %v787 = vmul.f32 %v782, %v786
    %v788 = vmul.f32 %v785, %v786
    %v789 = vsub.f32 %v778, %v787
    %v790 = vsub.f32 %v779, %v788
    %v791 = vmul.f32 %v789, %v789
    %v792 = vmul.f32 %v790, %v790
    %v793 = vsel %vm594, %v791, 0.0
    %794 = vadd.xlane.f32.xlu0 %v793
    %v795 = vpop.xlane.xlu0 %794
    %v796 = vsel %vm594, %v792, 0.0
    %797 = vadd.xlane.f32.xlu0 %v796
    %v798 = vpop.xlane.xlu0 %797
    %v799 = vmul.f32 %v795, %v786
    %v800 = vmul.f32 %v798, %v786
    %v801 = vadd.f32 %v799, 1e-05
    %v802 = vadd.f32 %v800, 1e-05
    %v803 = vrsqrt.pop %v801
    %v804 = vrsqrt.pop %v802
    %v805 = vmul.f32 %v789, %v803
    %v806 = vmul.f32 %v790, %v804
    %v807 = vld [vmem:[%s9] sm:$0x1]
    %v809 = vlaneseq
    %v810 = vshrl.u32 %v809, 7
    %v811 = vsub.s32 0, %v810
    %v812 = vrot.slane %v807, %v811
    %v814 = vmul.f32 %v805, %v812
    %v815 = vmul.f32 %v806, %v812
    %v816 = vld [vmem:[%s10] sm:$0x1]
    %v818 = vlaneseq
    %v819 = vshrl.u32 %v818, 7
    %v820 = vsub.s32 0, %v819
    %v821 = vrot.slane %v816, %v820
    %v823 = vadd.f32 %v814, %v821
    %v824 = vadd.f32 %v815, %v821
    %v826 = vsel %vm594, %v823, 0
    %v829 = vsel %vm594, %v824, 0
    %831 = vmatprep.subr.mxu0 0.0
    %832 = vmatpush1.xpose.msra.mxu0 %v826
    %833 = vmatprep.subr.mxu0 0.0
    %834 = vmatpush1.xpose.msra.mxu0 %v829
    %835 = vmatprep.subr.mxu0 0.0
    %836 = vmatpush1.xpose.msra.mxu0 0.0
    %837 = vmatprep.subr.mxu0 0.0
    %838 = vmatpush1.xpose.msra.mxu0 0.0
    %839 = vmatprep.subr.mxu0 0.0
    %840 = vmatpush1.xpose.msra.mxu0 0.0
    %841 = vmatprep.subr.mxu0 0.0
    %842 = vmatpush1.xpose.msra.mxu0 0.0
    %843 = vmatprep.subr.mxu0 0.0
    %844 = vmatpush1.xpose.msra.mxu0 0.0
    %845 = vmatprep.subr.mxu0 0.0
    %846 = vmatpush1.xpose.msra.mxu0 0.0
    %847 = vmatprep.subr.mxu0 0.0
    %848 = vmatpush1.xpose.msra.mxu0 0.0
    %849 = vmatprep.subr.mxu0 0.0
    %850 = vmatpush1.xpose.msra.mxu0 0.0
    %851 = vmatprep.subr.mxu0 0.0
    %852 = vmatpush1.xpose.msra.mxu0 0.0
    %853 = vmatprep.subr.mxu0 0.0
    %854 = vmatpush1.xpose.msra.mxu0 0.0
    %855 = vmatprep.subr.mxu0 0.0
    %856 = vmatpush1.xpose.msra.mxu0 0.0
    %857 = vmatprep.subr.mxu0 0.0
    %858 = vmatpush1.xpose.msra.mxu0 0.0
    %859 = vmatprep.subr.mxu0 0.0
    %860 = vmatpush1.xpose.msra.mxu0 0.0
    %861 = vmatprep.subr.mxu0 0.0
    %862 = vmatpush1.xpose.msra.mxu0 0.0
    %863 = vmatprep.subr.mxu0 0.0
    %864 = vmatpush1.xpose.msra.mxu0 0.0
    %865 = vmatprep.subr.mxu0 0.0
    %866 = vmatpush1.xpose.msra.mxu0 0.0
    %867 = vmatprep.subr.mxu0 0.0
    %868 = vmatpush1.xpose.msra.mxu0 0.0
    %869 = vmatprep.subr.mxu0 0.0
    %870 = vmatpush1.xpose.msra.mxu0 0.0
    %871 = vmatprep.subr.mxu0 0.0
    %872 = vmatpush1.xpose.msra.mxu0 0.0
    %873 = vmatprep.subr.mxu0 0.0
    %874 = vmatpush1.xpose.msra.mxu0 0.0
    %875 = vmatprep.subr.mxu0 0.0
    %876 = vmatpush1.xpose.msra.mxu0 0.0
    %877 = vmatprep.subr.mxu0 0.0
    %878 = vmatpush1.xpose.msra.mxu0 0.0
    %879 = vmatprep.subr.mxu0 0.0
    %880 = vmatpush1.xpose.msra.mxu0 0.0
    %881 = vmatprep.subr.mxu0 0.0
    %882 = vmatpush1.xpose.msra.mxu0 0.0
    %883 = vmatprep.subr.mxu0 0.0
    %884 = vmatpush1.xpose.msra.mxu0 0.0
    %885 = vmatprep.subr.mxu0 0.0
    %886 = vmatpush1.xpose.msra.mxu0 0.0
    %887 = vmatprep.subr.mxu0 0.0
    %888 = vmatpush1.xpose.msra.mxu0 0.0
    %889 = vmatprep.subr.mxu0 0.0
    %890 = vmatpush1.xpose.msra.mxu0 0.0
    %891 = vmatprep.subr.mxu0 0.0
    %892 = vmatpush1.xpose.msra.mxu0 0.0
    %893 = vmatprep.subr.mxu0 0.0
    %894 = vmatpush1.xpose.msra.mxu0 0.0
    %895 = vmatprep.mubr.f32.mxu0 0.0
    %896 = vmatmul.mubr.f32.gmra.mrb[0].mxu0 %v826
    %v897 = vpop.f32.mrb[0].mxu0
    %v898 = vadd.f32 0.0, %v897
    %v899 = vpop.f32.mrb[0].mxu0
    %900 = vmatprep.mubr.f32.mxu0 0.0
    %901 = vmatmul.mubr.f32.gmra.mrb[0].mxu0 %v829
    %v902 = vpop.f32.mrb[0].mxu0
    %v903 = vadd.f32 0.0, %v902
    %v904 = vpop.f32.mrb[0].mxu0
    %905 = vdwg.mxu0
    %907 = vrot.lane.b32.xlu0 %v903, 120
    %v908 = vpop.permute.xlu0 %907
    %v910 = vadd.f32 %v898, %v908
    %v911 = vmul.f32 %v910, 0.5
    %v912 = vsel %vm448, %v911, -inf
    %913 = vmax.xlane.f32.xlu0 %v912
    %v914 = vpop.xlane.xlu0 %913
    %v915 = vsub.f32 %v911, %v914
    %v916 = vmul.f32 %v915, 1.442695
    %v917 = vpow.pop %v916
    %v918 = vsel %vm448, %v917, 0.0
    %919 = vadd.xlane.f32.xlu0 %v918
    %v920 = vpop.xlane.xlu0 %919
    %v921 = vrcp.pop %v920
    %v922 = vmul.f32 %v917, %v921
    %v923 = vrot.slane %v912, 4
    %v924 = vmax.f32 %v912, %v923
    %v925 = vrot.slane %v924, 2
    %v926 = vmax.f32 %v924, %v925
    %v927 = vrot.slane %v926, 1
    %v928 = vmax.f32 %v926, %v927
    %v929 = vsub.f32 %v911, %v928
    %v930 = vmul.f32 %v929, 1.442695
    %v931 = vpow.pop %v930
    %v932 = vsel %vm448, %v931, 0.0
    %v933 = vrot.slane %v932, 4
    %v934 = vadd.f32 %v932, %v933
    %v935 = vrot.slane %v934, 2
    %v936 = vadd.f32 %v934, %v935
    %v937 = vrot.slane %v936, 1
    %v938 = vadd.f32 %v936, %v937
    %v939 = vrcp.pop %v938
    %v940 = vmul.f32 %v931, %v939
    %v941 = vsub.f32 0.0, %v922
    %v942 = vsel %vm448, %v903, -inf
    %943 = vmax.xlane.f32.xlu0 %v942
    %v944 = vpop.xlane.xlu0 %943
    %v945 = vsub.f32 %v903, %v944
    %v946 = vmul.f32 %v945, 1.442695
    %v947 = vpow.pop %v946
    %v948 = vsel %vm448, %v947, 0.0
    %949 = vadd.xlane.f32.xlu0 %v948
    %v950 = vpop.xlane.xlu0 %949
    %v951 = vlog2.pop %v950
    %v952 = vmul.f32 %v951, 0.6931472
    %v953 = vsub.f32 %v945, %v952
    %v954 = vmul.f32 %v941, %v953
    %v955 = vsel %vm448, %v954, 0.0
    %956 = vadd.xlane.f32.xlu0 %v955
    %v957 = vpop.xlane.xlu0 %956
    %v958 = vsub.f32 0.0, %v940
    %vm959 = vcmask 130112
    %v960 = vsel %vm959, %v898, -inf
    %961 = vmax.xlane.f32.xlu0 %v960
    %v962 = vpop.xlane.xlu0 %961
    %v963 = vsub.f32 %v898, %v962
    %v964 = vmul.f32 %v963, 1.442695
    %v965 = vpow.pop %v964
    %967 = vrot.lane.b32.xlu0 %v965, 120
    %v968 = vpop.permute.xlu0 %967
    %v970 = vsel %vm448, %v968, 0.0
    %971 = vadd.xlane.f32.xlu0 %v970
    %v972 = vpop.xlane.xlu0 %971
    %v973 = vlog2.pop %v972
    %v974 = vmul.f32 %v973, 0.6931472
    %v975 = vsub.f32 %v963, %v974
    %977 = vrot.lane.b32.xlu0 %v975, 120
    %v978 = vpop.permute.xlu0 %977
    %v980 = vmul.f32 %v958, %v978
    %v981 = vsel %vm448, %v980, 0.0
    %982 = vadd.xlane.f32.xlu0 %v981
    %v983 = vpop.xlane.xlu0 %982
    %vm984 = vcmask 7168
    %v985 = vsel %vm984, %v957, 0.0
    %986 = vadd.xlane.f32.xlu0 %v985
    %v987 = vpop.xlane.xlu0 %986
    %v988 = vrot.slane %v987, 4
    %v989 = vadd.f32 %v987, %v988
    %v990 = vrot.slane %v989, 2
    %v991 = vadd.f32 %v989, %v990
    %v992 = vrot.slane %v991, 1
    %v993 = vadd.f32 %v991, %v992
    %s994 = vtos %v993
    %v995 = vsel %vm984, %v983, 0.0
    %996 = vadd.xlane.f32.xlu0 %v995
    %v997 = vpop.xlane.xlu0 %996
    %v998 = vrot.slane %v997, 4
    %v999 = vadd.f32 %v997, %v998
    %v1000 = vrot.slane %v999, 2
    %v1001 = vadd.f32 %v999, %v1000
    %v1002 = vrot.slane %v1001, 1
    %v1003 = vadd.f32 %v1001, %v1002
    %s1004 = vtos %v1003
    %s1005 = sadd.f32 %s994, %s1004
    %s1006 = smul.f32 %s1005, 0.0625
    %s1007 = scalar_lea.smem [#allocation2], 0
    %1008 = sst [smem:[%s1007]] %s1006
    // Predicated region
    $region46: #{tpu_custom_call.1} parent=1 // pred_check
      _
    $region47: #{tpu_custom_call.1} parent=1 // pred_check_branch
      %1010 = sbr.rel (0) target = $region49
    $region48: #{tpu_custom_call.1} parent=1 // pred_region
      %s1012 = ssub.s32 16, 16
      %1013 = vsyncadd [#allocation3], %s1012
      %1016 = dma.smem_to_hbm [#allocation2], 16, %s11, [#allocation3]
    $region49: #{tpu_custom_call.1} parent=1 // pred_fallthru
      _
    // Predicated region
    $region50: #{tpu_custom_call.1} parent=1 // pred_check
      _
    $region51: #{tpu_custom_call.1} parent=1 // pred_check_branch
      %1018 = sbr.rel (0) target = $region53
    $region52: #{tpu_custom_call.1} parent=1 // pred_region
      %1019 = dma.done [#allocation3], 16
    $region53: #{tpu_custom_call.1} parent=1 // pred_fallthru
      _
    %1020 = sfence
    %1021 = vsyncpa [#allocation3], 1

</llo_original>
